<compile_context>
chip_gen: v7x
topology: tpu7x:2x2x1
jax: 0.10.0
libtpu: 0.0.40
codegen_flags: <defaults>
</compile_context>

<pallas_src>
import functools

import jax
import jax.numpy as jnp
from jax.experimental import pallas as pl
from jax.experimental.pallas import tpu as pltpu

_BN_EPS = 1e-5


# ----------------------------------------------------------------------------
# Fused kernel
# ----------------------------------------------------------------------------
def _bn_prelu(y, gamma, beta, alpha):
    """Training-mode BatchNorm1d folded into scale/shift, then PReLU."""
    mean = jnp.mean(y, axis=0, keepdims=True)                       # (1, H)
    var = jnp.mean(y * y, axis=0, keepdims=True) - mean * mean      # (1, H) biased var
    var = jnp.maximum(var, 0.0)                                     # guard cancellation
    scale = gamma * jax.lax.rsqrt(var + _BN_EPS)                    # rsqrt -> EUP slot
    shift = beta - mean * scale
    y = y * scale + shift                                           # one mul + one add / elem
    return jnp.where(y >= 0.0, y, alpha * y)                        # PReLU, shared alpha


def fused_forward_kernel(nlayers, *args):
    """Entire forward pass: virtual concat -> [Linear->BN->PReLU] x nlayers
    -> scorer (VPU mul + lane reduce) -> sigmoid.  Activation stays in vregs."""
    o_ref = args[-1]
    it = iter(args[:-1])

    # Embedding inputs
    t1_ref, i1_ref, t2_ref, i2_ref = next(it), next(it), next(it), next(it)
    # Layer 0 weight split into 4 row blocks (one per concatenated input) + bias/BN params
    w0t1_ref, w0i1_ref, w0t2_ref, w0i2_ref = next(it), next(it), next(it), next(it)
    b0_ref, g0_ref, bt0_ref = next(it), next(it), next(it)
    # Layers 1..nlayers-1: (W, b, gamma, beta)
    mid = [(next(it), next(it), next(it), next(it)) for _ in range(nlayers - 1)]
    # PReLU alphas (SMEM, (1, nlayers)), scorer weight row (1, H), scorer bias (SMEM (1,1))
    alphas_ref, ws_ref, bs_ref = next(it), next(it), next(it)

    # --- layer 0: Linear over virtual concat [t1|i1|t2|i2] as four partial matmuls ---
    y = (
        jnp.dot(t1_ref[...], w0t1_ref[...], preferred_element_type=jnp.float32)
        + jnp.dot(i1_ref[...], w0i1_ref[...], preferred_element_type=jnp.float32)
        + jnp.dot(t2_ref[...], w0t2_ref[...], preferred_element_type=jnp.float32)
        + jnp.dot(i2_ref[...], w0i2_ref[...], preferred_element_type=jnp.float32)
        + b0_ref[...]
    )
    y = _bn_prelu(y, g0_ref[...], bt0_ref[...], alphas_ref[0, 0])

    # --- layers 1..nlayers-1 (unrolled at trace time; activation stays resident) ---
    for l, (w_ref, b_ref, g_ref, bt_ref) in enumerate(mid, start=1):
        y = jnp.dot(y, w_ref[...], preferred_element_type=jnp.float32) + b_ref[...]
        y = _bn_prelu(y, g_ref[...], bt_ref[...], alphas_ref[0, l])

    # --- scorer: Linear(H, 1) as elementwise mul + lane reduction (skip N=1 MXU matmul) ---
    logits = jnp.sum(y * ws_ref[...], axis=-1, keepdims=True) + bs_ref[0, 0]   # (B, 1)
    o_ref[...] = jax.nn.sigmoid(logits).astype(o_ref.dtype)


# ----------------------------------------------------------------------------
# Wrapper: one pallas_call for the whole forward pass
# ----------------------------------------------------------------------------
def pairwise_binary_classifier(params, text_emb1, img_emb1, text_emb2, img_emb2):
    nlayers = len(params["mid_layers"]) + 1
    B = text_emb1.shape[0]

    vmem = pl.BlockSpec(memory_space=pltpu.MemorySpace.VMEM)
    smem = pl.BlockSpec(memory_space=pltpu.MemorySpace.SMEM)

    inputs = [
        text_emb1, img_emb1, text_emb2, img_emb2,
        *params["w0_parts"], params["b0"], params["g0"], params["bt0"],
    ]
    specs = [vmem] * len(inputs)
    for (w, b, g, bt) in params["mid_layers"]:
        inputs += [w, b, g, bt]
        specs += [vmem, vmem, vmem, vmem]
    inputs += [params["alphas"], params["scorer_w"], params["scorer_b"]]
    specs += [smem, vmem, smem]

    kernel = functools.partial(fused_forward_kernel, nlayers)
    return pl.pallas_call(
        kernel,
        out_shape=jax.ShapeDtypeStruct((B, 1), jnp.float32),
        in_specs=specs,
        out_specs=vmem,
    )(*inputs)


# ----------------------------------------------------------------------------
# Parameter construction (deterministic; shapes/layout precomputed once)
# ----------------------------------------------------------------------------
def xavier_uniform(key, fan_in, fan_out):
    limit = jnp.sqrt(6.0 / (fan_in + fan_out))
    # stored as (fan_in, fan_out) = pre-transposed nn.Linear weight
    return jax.random.uniform(
        key, (fan_in, fan_out), minval=-limit, maxval=limit, dtype=jnp.float32
    )


def init_params(key, text_emb_size, img_emb_size, hidden_size, nlayers):
    T, I, H = text_emb_size, img_emb_size, hidden_size
    input_size = 2 * (T + I)

    key, wk = jax.random.split(key)
    w0 = xavier_uniform(wk, input_size, H)
    # Split the first-layer weight by concat segment so the kernel never needs the concat.
    w0_parts = (
        w0[:T],                  # text_emb1 rows
        w0[T:T + I],             # img_emb1 rows
        w0[T + I:2 * T + I],     # text_emb2 rows
        w0[2 * T + I:],          # img_emb2 rows
    )
    params = {
        "w0_parts": tuple(jnp.asarray(p, jnp.float32) for p in w0_parts),
        "b0": jnp.zeros((1, H), jnp.float32),    # Linear bias
        "g0": jnp.ones((1, H), jnp.float32),     # BatchNorm1d weight
        "bt0": jnp.zeros((1, H), jnp.float32),   # BatchNorm1d bias
        "mid_layers": [],
    }
    for _ in range(nlayers - 1):
        key, wk = jax.random.split(key)
        params["mid_layers"].append(
            (
                xavier_uniform(wk, H, H),
                jnp.zeros((1, H), jnp.float32),
                jnp.ones((1, H), jnp.float32),
                jnp.zeros((1, H), jnp.float32),
            )
        )
    # PReLU default: single shared alpha = 0.25 per layer (stacked, lives in SMEM)
    params["alphas"] = jnp.full((1, nlayers), 0.25, jnp.float32)

    key, sk = jax.random.split(key)
    params["scorer_w"] = xavier_uniform(sk, H, 1).reshape(1, H)   # scorer weight as row
    params["scorer_b"] = jnp.zeros((1, 1), jnp.float32)
    return params


# ----------------------------------------------------------------------------
# Demo / smoke test
# ----------------------------------------------------------------------------
if __name__ == "__main__":
    text_emb_size = 16
    img_emb_size = 8
    hidden_size = 32
    nlayers = 2
    batch = 8

    key = jax.random.PRNGKey(0)
    pkey, k1, k2, k3, k4 = jax.random.split(key, 5)

    params = init_params(pkey, text_emb_size, img_emb_size, hidden_size, nlayers)

    text_emb1 = jax.random.normal(k1, (batch, text_emb_size), jnp.float32)
    img_emb1 = jax.random.normal(k2, (batch, img_emb_size), jnp.float32)
    text_emb2 = jax.random.normal(k3, (batch, text_emb_size), jnp.float32)
    img_emb2 = jax.random.normal(k4, (batch, img_emb_size), jnp.float32)

    out = pairwise_binary_classifier(params, text_emb1, img_emb1, text_emb2, img_emb2)
    out = jax.block_until_ready(out)
    assert out.shape == (batch, 1)
    assert bool(jnp.all((out >= 0.0) & (out <= 1.0)))
    print("KERNEL_OK")
</pallas_src>

<mosaic_0001>
module attributes {stable_mosaic.version = 11 : i64} {
  func.func @fused_forward_kernel(%arg0: memref<8x16xf32, #tpu.memory_space<vmem>>, %arg1: memref<8x8xf32, #tpu.memory_space<vmem>>, %arg2: memref<8x16xf32, #tpu.memory_space<vmem>>, %arg3: memref<8x8xf32, #tpu.memory_space<vmem>>, %arg4: memref<16x32xf32, #tpu.memory_space<vmem>>, %arg5: memref<8x32xf32, #tpu.memory_space<vmem>>, %arg6: memref<16x32xf32, #tpu.memory_space<vmem>>, %arg7: memref<8x32xf32, #tpu.memory_space<vmem>>, %arg8: memref<1x32xf32, #tpu.memory_space<vmem>>, %arg9: memref<1x32xf32, #tpu.memory_space<vmem>>, %arg10: memref<1x32xf32, #tpu.memory_space<vmem>>, %arg11: memref<32x32xf32, #tpu.memory_space<vmem>>, %arg12: memref<1x32xf32, #tpu.memory_space<vmem>>, %arg13: memref<1x32xf32, #tpu.memory_space<vmem>>, %arg14: memref<1x32xf32, #tpu.memory_space<vmem>>, %arg15: memref<1x2xf32, #tpu.memory_space<smem>>, %arg16: memref<1x32xf32, #tpu.memory_space<vmem>>, %arg17: memref<1x1xf32, #tpu.memory_space<smem>>, %arg18: memref<8x1xf32, #tpu.memory_space<vmem>>) attributes {dimension_semantics = [], scalar_prefetch = 0 : i64, scratch_operands = 0 : i64, tpu.core_type = #tpu.core_type<tc>} {
    %c0 = arith.constant 0 : index
    %c0_0 = arith.constant 0 : index
    %0 = vector.load %arg0[%c0, %c0_0] : memref<8x16xf32, #tpu.memory_space<vmem>>, vector<8x16xf32>
    %c0_1 = arith.constant 0 : index
    %c0_2 = arith.constant 0 : index
    %1 = vector.load %arg4[%c0_1, %c0_2] : memref<16x32xf32, #tpu.memory_space<vmem>>, vector<16x32xf32>
    %cst = arith.constant dense<0.000000e+00> : vector<8x32xf32>
    %2 = tpu.matmul %0, %1, %cst {dimension_numbers = #tpu.dot_dimension_numbers<[1], [0], [0], [1], [0, 0, 1, 1], [], []>} : vector<8x16xf32>, vector<16x32xf32>, vector<8x32xf32> -> vector<8x32xf32>
    %c0_3 = arith.constant 0 : index
    %c0_4 = arith.constant 0 : index
    %3 = vector.load %arg1[%c0_3, %c0_4] : memref<8x8xf32, #tpu.memory_space<vmem>>, vector<8x8xf32>
    %c0_5 = arith.constant 0 : index
    %c0_6 = arith.constant 0 : index
    %4 = vector.load %arg5[%c0_5, %c0_6] : memref<8x32xf32, #tpu.memory_space<vmem>>, vector<8x32xf32>
    %cst_7 = arith.constant dense<0.000000e+00> : vector<8x32xf32>
    %5 = tpu.matmul %3, %4, %cst_7 {dimension_numbers = #tpu.dot_dimension_numbers<[1], [0], [0], [1], [0, 0, 1, 1], [], []>} : vector<8x8xf32>, vector<8x32xf32>, vector<8x32xf32> -> vector<8x32xf32>
    %6 = arith.addf %2, %5 : vector<8x32xf32>
    %c0_8 = arith.constant 0 : index
    %c0_9 = arith.constant 0 : index
    %7 = vector.load %arg2[%c0_8, %c0_9] : memref<8x16xf32, #tpu.memory_space<vmem>>, vector<8x16xf32>
    %c0_10 = arith.constant 0 : index
    %c0_11 = arith.constant 0 : index
    %8 = vector.load %arg6[%c0_10, %c0_11] : memref<16x32xf32, #tpu.memory_space<vmem>>, vector<16x32xf32>
    %cst_12 = arith.constant dense<0.000000e+00> : vector<8x32xf32>
    %9 = tpu.matmul %7, %8, %cst_12 {dimension_numbers = #tpu.dot_dimension_numbers<[1], [0], [0], [1], [0, 0, 1, 1], [], []>} : vector<8x16xf32>, vector<16x32xf32>, vector<8x32xf32> -> vector<8x32xf32>
    %10 = arith.addf %6, %9 : vector<8x32xf32>
    %c0_13 = arith.constant 0 : index
    %c0_14 = arith.constant 0 : index
    %11 = vector.load %arg3[%c0_13, %c0_14] : memref<8x8xf32, #tpu.memory_space<vmem>>, vector<8x8xf32>
    %c0_15 = arith.constant 0 : index
    %c0_16 = arith.constant 0 : index
    %12 = vector.load %arg7[%c0_15, %c0_16] : memref<8x32xf32, #tpu.memory_space<vmem>>, vector<8x32xf32>
    %cst_17 = arith.constant dense<0.000000e+00> : vector<8x32xf32>
    %13 = tpu.matmul %11, %12, %cst_17 {dimension_numbers = #tpu.dot_dimension_numbers<[1], [0], [0], [1], [0, 0, 1, 1], [], []>} : vector<8x8xf32>, vector<8x32xf32>, vector<8x32xf32> -> vector<8x32xf32>
    %14 = arith.addf %10, %13 : vector<8x32xf32>
    %c0_18 = arith.constant 0 : index
    %c0_19 = arith.constant 0 : index
    %15 = vector.load %arg8[%c0_18, %c0_19] : memref<1x32xf32, #tpu.memory_space<vmem>>, vector<1x32xf32>
    %16 = vector.broadcast %15 : vector<1x32xf32> to vector<8x32xf32>
    %17 = arith.addf %14, %16 : vector<8x32xf32>
    %c0_20 = arith.constant 0 : index
    %c0_21 = arith.constant 0 : index
    %18 = vector.load %arg9[%c0_20, %c0_21] : memref<1x32xf32, #tpu.memory_space<vmem>>, vector<1x32xf32>
    %c0_22 = arith.constant 0 : index
    %c0_23 = arith.constant 0 : index
    %19 = vector.load %arg10[%c0_22, %c0_23] : memref<1x32xf32, #tpu.memory_space<vmem>>, vector<1x32xf32>
    %c0_24 = arith.constant 0 : index
    %c0_25 = arith.constant 0 : index
    %20 = memref.load %arg15[%c0_24, %c0_25] : memref<1x2xf32, #tpu.memory_space<smem>>
    %cst_26 = arith.constant dense<0.000000e+00> : vector<32xf32>
    %21 = vector.multi_reduction <add>, %17, %cst_26 [0] : vector<8x32xf32> to vector<32xf32>
    %22 = vector.shape_cast %21 : vector<32xf32> to vector<1x32xf32>
    %cst_27 = arith.constant 8.000000e+00 : f32
    %23 = vector.broadcast %cst_27 : f32 to vector<1x32xf32>
    %24 = arith.divf %22, %23 : vector<1x32xf32>
    %25 = arith.mulf %17, %17 : vector<8x32xf32>
    %cst_28 = arith.constant dense<0.000000e+00> : vector<32xf32>
    %26 = vector.multi_reduction <add>, %25, %cst_28 [0] : vector<8x32xf32> to vector<32xf32>
    %27 = vector.shape_cast %26 : vector<32xf32> to vector<1x32xf32>
    %cst_29 = arith.constant 8.000000e+00 : f32
    %28 = vector.broadcast %cst_29 : f32 to vector<1x32xf32>
    %29 = arith.divf %27, %28 : vector<1x32xf32>
    %30 = arith.mulf %24, %24 : vector<1x32xf32>
    %31 = arith.subf %29, %30 : vector<1x32xf32>
    %cst_30 = arith.constant 0.000000e+00 : f32
    %32 = vector.broadcast %cst_30 : f32 to vector<1x32xf32>
    %33 = arith.maximumf %31, %32 : vector<1x32xf32>
    %cst_31 = arith.constant 9.99999974E-6 : f32
    %34 = vector.broadcast %cst_31 : f32 to vector<1x32xf32>
    %35 = arith.addf %33, %34 : vector<1x32xf32>
    %36 = math.rsqrt %35 : vector<1x32xf32>
    %37 = arith.mulf %18, %36 : vector<1x32xf32>
    %38 = arith.mulf %24, %37 : vector<1x32xf32>
    %39 = arith.subf %19, %38 : vector<1x32xf32>
    %40 = vector.broadcast %37 : vector<1x32xf32> to vector<8x32xf32>
    %41 = arith.mulf %17, %40 : vector<8x32xf32>
    %42 = vector.broadcast %39 : vector<1x32xf32> to vector<8x32xf32>
    %43 = arith.addf %41, %42 : vector<8x32xf32>
    %cst_32 = arith.constant 0.000000e+00 : f32
    %44 = vector.broadcast %cst_32 : f32 to vector<8x32xf32>
    %45 = arith.cmpf oge, %43, %44 : vector<8x32xf32>
    %46 = vector.broadcast %20 : f32 to vector<8x32xf32>
    %47 = arith.mulf %46, %43 : vector<8x32xf32>
    %48 = arith.select %45, %43, %47 : vector<8x32xi1>, vector<8x32xf32>
    %c0_33 = arith.constant 0 : index
    %c0_34 = arith.constant 0 : index
    %49 = vector.load %arg11[%c0_33, %c0_34] : memref<32x32xf32, #tpu.memory_space<vmem>>, vector<32x32xf32>
    %cst_35 = arith.constant dense<0.000000e+00> : vector<8x32xf32>
    %50 = tpu.matmul %48, %49, %cst_35 {dimension_numbers = #tpu.dot_dimension_numbers<[1], [0], [0], [1], [0, 0, 1, 1], [], []>} : vector<8x32xf32>, vector<32x32xf32>, vector<8x32xf32> -> vector<8x32xf32>
    %c0_36 = arith.constant 0 : index
    %c0_37 = arith.constant 0 : index
    %51 = vector.load %arg12[%c0_36, %c0_37] : memref<1x32xf32, #tpu.memory_space<vmem>>, vector<1x32xf32>
    %52 = vector.broadcast %51 : vector<1x32xf32> to vector<8x32xf32>
    %53 = arith.addf %50, %52 : vector<8x32xf32>
    %c0_38 = arith.constant 0 : index
    %c0_39 = arith.constant 0 : index
    %54 = vector.load %arg13[%c0_38, %c0_39] : memref<1x32xf32, #tpu.memory_space<vmem>>, vector<1x32xf32>
    %c0_40 = arith.constant 0 : index
    %c0_41 = arith.constant 0 : index
    %55 = vector.load %arg14[%c0_40, %c0_41] : memref<1x32xf32, #tpu.memory_space<vmem>>, vector<1x32xf32>
    %c0_42 = arith.constant 0 : index
    %c1 = arith.constant 1 : index
    %56 = memref.load %arg15[%c0_42, %c1] : memref<1x2xf32, #tpu.memory_space<smem>>
    %cst_43 = arith.constant dense<0.000000e+00> : vector<32xf32>
    %57 = vector.multi_reduction <add>, %53, %cst_43 [0] : vector<8x32xf32> to vector<32xf32>
    %58 = vector.shape_cast %57 : vector<32xf32> to vector<1x32xf32>
    %cst_44 = arith.constant 8.000000e+00 : f32
    %59 = vector.broadcast %cst_44 : f32 to vector<1x32xf32>
    %60 = arith.divf %58, %59 : vector<1x32xf32>
    %61 = arith.mulf %53, %53 : vector<8x32xf32>
    %cst_45 = arith.constant dense<0.000000e+00> : vector<32xf32>
    %62 = vector.multi_reduction <add>, %61, %cst_45 [0] : vector<8x32xf32> to vector<32xf32>
    %63 = vector.shape_cast %62 : vector<32xf32> to vector<1x32xf32>
    %cst_46 = arith.constant 8.000000e+00 : f32
    %64 = vector.broadcast %cst_46 : f32 to vector<1x32xf32>
    %65 = arith.divf %63, %64 : vector<1x32xf32>
    %66 = arith.mulf %60, %60 : vector<1x32xf32>
    %67 = arith.subf %65, %66 : vector<1x32xf32>
    %cst_47 = arith.constant 0.000000e+00 : f32
    %68 = vector.broadcast %cst_47 : f32 to vector<1x32xf32>
    %69 = arith.maximumf %67, %68 : vector<1x32xf32>
    %cst_48 = arith.constant 9.99999974E-6 : f32
    %70 = vector.broadcast %cst_48 : f32 to vector<1x32xf32>
    %71 = arith.addf %69, %70 : vector<1x32xf32>
    %72 = math.rsqrt %71 : vector<1x32xf32>
    %73 = arith.mulf %54, %72 : vector<1x32xf32>
    %74 = arith.mulf %60, %73 : vector<1x32xf32>
    %75 = arith.subf %55, %74 : vector<1x32xf32>
    %76 = vector.broadcast %73 : vector<1x32xf32> to vector<8x32xf32>
    %77 = arith.mulf %53, %76 : vector<8x32xf32>
    %78 = vector.broadcast %75 : vector<1x32xf32> to vector<8x32xf32>
    %79 = arith.addf %77, %78 : vector<8x32xf32>
    %cst_49 = arith.constant 0.000000e+00 : f32
    %80 = vector.broadcast %cst_49 : f32 to vector<8x32xf32>
    %81 = arith.cmpf oge, %79, %80 : vector<8x32xf32>
    %82 = vector.broadcast %56 : f32 to vector<8x32xf32>
    %83 = arith.mulf %82, %79 : vector<8x32xf32>
    %84 = arith.select %81, %79, %83 : vector<8x32xi1>, vector<8x32xf32>
    %c0_50 = arith.constant 0 : index
    %c0_51 = arith.constant 0 : index
    %85 = vector.load %arg16[%c0_50, %c0_51] : memref<1x32xf32, #tpu.memory_space<vmem>>, vector<1x32xf32>
    %86 = vector.broadcast %85 : vector<1x32xf32> to vector<8x32xf32>
    %87 = arith.mulf %84, %86 : vector<8x32xf32>
    %cst_52 = arith.constant dense<0.000000e+00> : vector<8xf32>
    %88 = vector.multi_reduction <add>, %87, %cst_52 [1] : vector<8x32xf32> to vector<8xf32>
    %89 = vector.shape_cast %88 : vector<8xf32> to vector<8x1xf32>
    %c0_53 = arith.constant 0 : index
    %c0_54 = arith.constant 0 : index
    %90 = memref.load %arg17[%c0_53, %c0_54] : memref<1x1xf32, #tpu.memory_space<smem>>
    %91 = vector.broadcast %90 : f32 to vector<8x1xf32>
    %92 = arith.addf %89, %91 : vector<8x1xf32>
    %93 = arith.negf %92 : vector<8x1xf32>
    %94 = math.exp %93 : vector<8x1xf32>
    %cst_55 = arith.constant 1.000000e+00 : f32
    %95 = vector.broadcast %cst_55 : f32 to vector<8x1xf32>
    %96 = arith.addf %95, %94 : vector<8x1xf32>
    %97 = arith.divf %95, %96 : vector<8x1xf32>
    %c0_56 = arith.constant 0 : index
    %c0_57 = arith.constant 0 : index
    %98 = vector.load %arg18[%c0_56, %c0_57] : memref<8x1xf32, #tpu.memory_space<vmem>>, vector<8x1xf32>
    tpu.vector_store %arg18[%c0_56, %c0_57], %97 {strides = array<i32>} : memref<8x1xf32, #tpu.memory_space<vmem>>, vector<8x1xf32>,
    return
  }
}

</mosaic_0001>

<llo_original>
// kernel: tpu_custom_call.1
$region0: #{tpu_custom_call.1}
  #allocation0 [shape = 'u32[]', space=smem, size = 0x4, offset = 0x4, fixed_abs, tag = 'smem constant byte address 0x4 - core index']
  #allocation1 [shape = 'u32[144,128]{1,0:T(1,128)}', space=vmem, size = 0x12000, scoped, tag = 'internal scratch']
  #allocation2 [shape = 'f32[1,1]{1,0:T(1,128)S(6)}', space=smem, size = 0x200, scoped, tag = 'scoped memory for tpu_custom_call.1']
  %s0 = inlined_call_operand.hbm [shape: f32[8,16], index: 0, kind: input, shape index: {}]
  %s1 = inlined_call_operand.hbm [shape: f32[8,8], index: 1, kind: input, shape index: {}]
  %s2 = inlined_call_operand.vmem [shape: f32[8,16], index: 2, kind: input, shape index: {}]
  %s3 = inlined_call_operand.hbm [shape: f32[8,8], index: 3, kind: input, shape index: {}]
  %s4 = inlined_call_operand.hbm [shape: f32[16,32], index: 4, kind: input, shape index: {}]
  %s5 = inlined_call_operand.hbm [shape: f32[8,32], index: 5, kind: input, shape index: {}]
  %s6 = inlined_call_operand.hbm [shape: f32[16,32], index: 6, kind: input, shape index: {}]
  %s7 = inlined_call_operand.hbm [shape: f32[8,32], index: 7, kind: input, shape index: {}]
  %s8 = inlined_call_operand.vmem [shape: f32[1,32], index: 8, kind: input, shape index: {}]
  %s9 = inlined_call_operand.vmem [shape: f32[1,32], index: 9, kind: input, shape index: {}]
  %s10 = inlined_call_operand.vmem [shape: f32[1,32], index: 10, kind: input, shape index: {}]
  %s11 = inlined_call_operand.vmem [shape: f32[32,32], index: 11, kind: input, shape index: {}]
  %s12 = inlined_call_operand.vmem [shape: f32[1,32], index: 12, kind: input, shape index: {}]
  %s13 = inlined_call_operand.vmem [shape: f32[1,32], index: 13, kind: input, shape index: {}]
  %s14 = inlined_call_operand.vmem [shape: f32[1,32], index: 14, kind: input, shape index: {}]
  %s15 = inlined_call_operand.vmem [shape: f32[1,2], index: 15, kind: input, shape index: {}]
  %s16 = inlined_call_operand.vmem [shape: f32[1,32], index: 16, kind: input, shape index: {}]
  %s17 = inlined_call_operand.<no memory space> [shape: f32[1,1], index: 17, kind: input, shape index: {}]
  %s18 = inlined_call_operand.vmem [shape: f32[8,1], index: 18, kind: output, shape index: {}]
  %s19 = sld [smem:[#allocation0]]
  $region114: #{tpu_custom_call.1} parent=0
    _
  %s21 = ssub.s32 1, %s19
  %s22 = scalar_select 0, %s21, %s19
  %23 = sst [smem:[#allocation2]] %s17
  $region1: #{tpu_custom_call.1} parent=0
    #allocation3 [shape = 'u8[4096]{0}', space=vmem, size = 0x1000, scoped, tag = 'input window, operand 0, single buffered']
    #allocation4 [shape = 's32[1]{0}', space=sflag, size = 0x4, scoped, tag = 'scoped memory for tpu_custom_call.1']
    #allocation5 [shape = 's32[1]{0}', space=sflag, size = 0x4, scoped, tag = 'scoped memory for tpu_custom_call.1']
    #allocation6 [shape = 'u8[4096]{0}', space=vmem, size = 0x1000, scoped, tag = 'input window, operand 1, single buffered']
    #allocation7 [shape = 's32[1]{0}', space=sflag, size = 0x4, scoped, tag = 'scoped memory for tpu_custom_call.1']
    #allocation8 [shape = 'u8[4096]{0}', space=vmem, size = 0x1000, scoped, tag = 'input window, operand 3, single buffered']
    #allocation9 [shape = 'u8[8192]{0}', space=vmem, size = 0x2000, scoped, tag = 'input window, operand 4, single buffered']
    #allocation10 [shape = 's32[1]{0}', space=sflag, size = 0x4, scoped, tag = 'scoped memory for tpu_custom_call.1']
    #allocation11 [shape = 'u8[4096]{0}', space=vmem, size = 0x1000, scoped, tag = 'input window, operand 5, single buffered']
    #allocation12 [shape = 'u8[8192]{0}', space=vmem, size = 0x2000, scoped, tag = 'input window, operand 6, single buffered']
    #allocation13 [shape = 's32[1]{0}', space=sflag, size = 0x4, scoped, tag = 'scoped memory for tpu_custom_call.1']
    #allocation14 [shape = 'u8[4096]{0}', space=vmem, size = 0x1000, scoped, tag = 'input window, operand 7, single buffered']
    #allocation15 [shape = 'u8[512]{0}', space=smem, size = 0x200, scoped, tag = 'input window, operand 15, single buffered']
    %24 = vsyncpa [#allocation4], 0
    %25 = vsyncpa [#allocation7], 0
    %26 = vsyncpa [#allocation10], 0
    %27 = vsyncpa [#allocation13], 0
    %28 = vsyncpa [#allocation5], 0
    // Predicated region
    $region2: #{tpu_custom_call.1} parent=1 // pred_check
      _
    $region3: #{tpu_custom_call.1} parent=1 // pred_check_branch
      %30 = sbr.rel (0) target = $region5
    $region4: #{tpu_custom_call.1} parent=1 // pred_region
      %s32 = ssub.s32 128, 128
      %33 = vsyncadd [#allocation4], %s32
      %s35 = sshll.u32 [#allocation3], 4
      %s36 = int_to_ptr.vmem [resolvable:$true] %s35
      %38 = dma.hbm_to_vmem [thread:$0]  %s0, 128, %s36, [#allocation4]
    $region5: #{tpu_custom_call.1} parent=1 // pred_fallthru
      _
    // Predicated region
    $region6: #{tpu_custom_call.1} parent=1 // pred_check
      _
    $region7: #{tpu_custom_call.1} parent=1 // pred_check_branch
      %40 = sbr.rel (0) target = $region9
    $region8: #{tpu_custom_call.1} parent=1 // pred_region
      %s42 = ssub.s32 128, 128
      %43 = vsyncadd [#allocation7], %s42
      %s45 = sshll.u32 [#allocation6], 4
      %s46 = int_to_ptr.vmem [resolvable:$true] %s45
      %48 = dma.hbm_to_vmem [thread:$0]  %s1, 128, %s46, [#allocation7]
    $region9: #{tpu_custom_call.1} parent=1 // pred_fallthru
      _
    // Predicated region
    $region10: #{tpu_custom_call.1} parent=1 // pred_check
      _
    $region11: #{tpu_custom_call.1} parent=1 // pred_check_branch
      %50 = sbr.rel (0) target = $region13
    $region12: #{tpu_custom_call.1} parent=1 // pred_region
      _
    $region13: #{tpu_custom_call.1} parent=1 // pred_fallthru
      _
    // Predicated region
    $region14: #{tpu_custom_call.1} parent=1 // pred_check
      _
    $region15: #{tpu_custom_call.1} parent=1 // pred_check_branch
      %52 = sbr.rel (0) target = $region17
    $region16: #{tpu_custom_call.1} parent=1 // pred_region
      %s54 = ssub.s32 128, 128
      %55 = vsyncadd [#allocation7], %s54
      %s57 = sshll.u32 [#allocation8], 4
      %s58 = int_to_ptr.vmem [resolvable:$true] %s57
      %60 = dma.hbm_to_vmem [thread:$0]  %s3, 128, %s58, [#allocation7]
    $region17: #{tpu_custom_call.1} parent=1 // pred_fallthru
      _
    // Predicated region
    $region18: #{tpu_custom_call.1} parent=1 // pred_check
      _
    $region19: #{tpu_custom_call.1} parent=1 // pred_check_branch
      %62 = sbr.rel (0) target = $region21
    $region20: #{tpu_custom_call.1} parent=1 // pred_region
      %s64 = ssub.s32 256, 256
      %65 = vsyncadd [#allocation10], %s64
      %s66 = sshll.u32 [#allocation9], 4
      %s67 = int_to_ptr.vmem [resolvable:$true] %s66
      %72 = dma.hbm_to_vmem [thread:$0]  %s4, 256, %s67, [#allocation10], 128, 128, 8
    $region21: #{tpu_custom_call.1} parent=1 // pred_fallthru
      _
    // Predicated region
    $region22: #{tpu_custom_call.1} parent=1 // pred_check
      _
    $region23: #{tpu_custom_call.1} parent=1 // pred_check_branch
      %74 = sbr.rel (0) target = $region25
    $region24: #{tpu_custom_call.1} parent=1 // pred_region
      %s76 = ssub.s32 128, 128
      %77 = vsyncadd [#allocation10], %s76
      %s79 = sshll.u32 [#allocation11], 4
      %s80 = int_to_ptr.vmem [resolvable:$true] %s79
      %82 = dma.hbm_to_vmem [thread:$0]  %s5, 128, %s80, [#allocation10]
    $region25: #{tpu_custom_call.1} parent=1 // pred_fallthru
      _
    // Predicated region
    $region26: #{tpu_custom_call.1} parent=1 // pred_check
      _
    $region27: #{tpu_custom_call.1} parent=1 // pred_check_branch
      %84 = sbr.rel (0) target = $region29
    $region28: #{tpu_custom_call.1} parent=1 // pred_region
      %s86 = ssub.s32 256, 256
      %87 = vsyncadd [#allocation13], %s86
      %s88 = sshll.u32 [#allocation12], 4
      %s89 = int_to_ptr.vmem [resolvable:$true] %s88
      %94 = dma.hbm_to_vmem [thread:$0]  %s6, 256, %s89, [#allocation13], 128, 128, 8
    $region29: #{tpu_custom_call.1} parent=1 // pred_fallthru
      _
    // Predicated region
    $region30: #{tpu_custom_call.1} parent=1 // pred_check
      _
    $region31: #{tpu_custom_call.1} parent=1 // pred_check_branch
      %96 = sbr.rel (0) target = $region33
    $region32: #{tpu_custom_call.1} parent=1 // pred_region
      %s98 = ssub.s32 128, 128
      %99 = vsyncadd [#allocation13], %s98
      %s101 = sshll.u32 [#allocation14], 4
      %s102 = int_to_ptr.vmem [resolvable:$true] %s101
      %104 = dma.hbm_to_vmem [thread:$0]  %s7, 128, %s102, [#allocation13]
    $region33: #{tpu_custom_call.1} parent=1 // pred_fallthru
      _
    // Predicated region
    $region34: #{tpu_custom_call.1} parent=1 // pred_check
      _
    $region35: #{tpu_custom_call.1} parent=1 // pred_check_branch
      %106 = sbr.rel (0) target = $region37
    $region36: #{tpu_custom_call.1} parent=1 // pred_region
      _
    $region37: #{tpu_custom_call.1} parent=1 // pred_fallthru
      _
    // Predicated region
    $region38: #{tpu_custom_call.1} parent=1 // pred_check
      _
    $region39: #{tpu_custom_call.1} parent=1 // pred_check_branch
      %108 = sbr.rel (0) target = $region41
    $region40: #{tpu_custom_call.1} parent=1 // pred_region
      _
    $region41: #{tpu_custom_call.1} parent=1 // pred_fallthru
      _
    // Predicated region
    $region42: #{tpu_custom_call.1} parent=1 // pred_check
      _
    $region43: #{tpu_custom_call.1} parent=1 // pred_check_branch
      %110 = sbr.rel (0) target = $region45
    $region44: #{tpu_custom_call.1} parent=1 // pred_region
      _
    $region45: #{tpu_custom_call.1} parent=1 // pred_fallthru
      _
    // Predicated region
    $region46: #{tpu_custom_call.1} parent=1 // pred_check
      _
    $region47: #{tpu_custom_call.1} parent=1 // pred_check_branch
      %112 = sbr.rel (0) target = $region49
    $region48: #{tpu_custom_call.1} parent=1 // pred_region
      _
    $region49: #{tpu_custom_call.1} parent=1 // pred_fallthru
      _
    // Predicated region
    $region50: #{tpu_custom_call.1} parent=1 // pred_check
      _
    $region51: #{tpu_custom_call.1} parent=1 // pred_check_branch
      %114 = sbr.rel (0) target = $region53
    $region52: #{tpu_custom_call.1} parent=1 // pred_region
      _
    $region53: #{tpu_custom_call.1} parent=1 // pred_fallthru
      _
    // Predicated region
    $region54: #{tpu_custom_call.1} parent=1 // pred_check
      _
    $region55: #{tpu_custom_call.1} parent=1 // pred_check_branch
      %116 = sbr.rel (0) target = $region57
    $region56: #{tpu_custom_call.1} parent=1 // pred_region
      _
    $region57: #{tpu_custom_call.1} parent=1 // pred_fallthru
      _
    // Predicated region
    $region58: #{tpu_custom_call.1} parent=1 // pred_check
      _
    $region59: #{tpu_custom_call.1} parent=1 // pred_check_branch
      %118 = sbr.rel (0) target = $region61
    $region60: #{tpu_custom_call.1} parent=1 // pred_region
      _
    $region61: #{tpu_custom_call.1} parent=1 // pred_fallthru
      _
    // Predicated region
    $region62: #{tpu_custom_call.1} parent=1 // pred_check
      _
    $region63: #{tpu_custom_call.1} parent=1 // pred_check_branch
      %120 = sbr.rel (0) target = $region65
    $region64: #{tpu_custom_call.1} parent=1 // pred_region
      %s122 = ssub.s32 16, 16
      %123 = vsyncadd [#allocation5], %s122
      %s125 = sshll.u32 %s15, 4
      %s126 = int_to_ptr.vmem [resolvable:$true] %s125
      %128 = dma.vmem_to_smem %s126, 16, [#allocation15], [#allocation5]
    $region65: #{tpu_custom_call.1} parent=1 // pred_fallthru
      _
    // Predicated region
    $region66: #{tpu_custom_call.1} parent=1 // pred_check
      _
    $region67: #{tpu_custom_call.1} parent=1 // pred_check_branch
      %130 = sbr.rel (0) target = $region69
    $region68: #{tpu_custom_call.1} parent=1 // pred_region
      _
    $region69: #{tpu_custom_call.1} parent=1 // pred_fallthru
      _
    // Predicated region
    $region70: #{tpu_custom_call.1} parent=1 // pred_check
      _
    $region71: #{tpu_custom_call.1} parent=1 // pred_check_branch
      %132 = sbr.rel (0) target = $region73
    $region72: #{tpu_custom_call.1} parent=1 // pred_region
      _
    $region73: #{tpu_custom_call.1} parent=1 // pred_fallthru
      _
    // Predicated region
    $region74: #{tpu_custom_call.1} parent=1 // pred_check
      _
    $region75: #{tpu_custom_call.1} parent=1 // pred_check_branch
      %134 = sbr.rel (0) target = $region77
    $region76: #{tpu_custom_call.1} parent=1 // pred_region
      %135 = dma.done [#allocation4], 128
    $region77: #{tpu_custom_call.1} parent=1 // pred_fallthru
      _
    // Predicated region
    $region78: #{tpu_custom_call.1} parent=1 // pred_check
      _
    $region79: #{tpu_custom_call.1} parent=1 // pred_check_branch
      %137 = sbr.rel (0) target = $region81
    $region80: #{tpu_custom_call.1} parent=1 // pred_region
      %138 = dma.done [#allocation7], 128
    $region81: #{tpu_custom_call.1} parent=1 // pred_fallthru
      _
    // Predicated region
    $region82: #{tpu_custom_call.1} parent=1 // pred_check
      _
    $region83: #{tpu_custom_call.1} parent=1 // pred_check_branch
      %140 = sbr.rel (0) target = $region85
    $region84: #{tpu_custom_call.1} parent=1 // pred_region
      %141 = dma.done [#allocation7], 128
    $region85: #{tpu_custom_call.1} parent=1 // pred_fallthru
      _
    // Predicated region
    $region86: #{tpu_custom_call.1} parent=1 // pred_check
      _
    $region87: #{tpu_custom_call.1} parent=1 // pred_check_branch
      %143 = sbr.rel (0) target = $region89
    $region88: #{tpu_custom_call.1} parent=1 // pred_region
      %144 = dma.done [#allocation10], 256
    $region89: #{tpu_custom_call.1} parent=1 // pred_fallthru
      _
    // Predicated region
    $region90: #{tpu_custom_call.1} parent=1 // pred_check
      _
    $region91: #{tpu_custom_call.1} parent=1 // pred_check_branch
      %146 = sbr.rel (0) target = $region93
    $region92: #{tpu_custom_call.1} parent=1 // pred_region
      %147 = dma.done [#allocation10], 128
    $region93: #{tpu_custom_call.1} parent=1 // pred_fallthru
      _
    // Predicated region
    $region94: #{tpu_custom_call.1} parent=1 // pred_check
      _
    $region95: #{tpu_custom_call.1} parent=1 // pred_check_branch
      %149 = sbr.rel (0) target = $region97
    $region96: #{tpu_custom_call.1} parent=1 // pred_region
      %150 = dma.done [#allocation13], 256
    $region97: #{tpu_custom_call.1} parent=1 // pred_fallthru
      _
    // Predicated region
    $region98: #{tpu_custom_call.1} parent=1 // pred_check
      _
    $region99: #{tpu_custom_call.1} parent=1 // pred_check_branch
      %152 = sbr.rel (0) target = $region101
    $region100: #{tpu_custom_call.1} parent=1 // pred_region
      %153 = dma.done [#allocation13], 128
    $region101: #{tpu_custom_call.1} parent=1 // pred_fallthru
      _
    // Predicated region
    $region102: #{tpu_custom_call.1} parent=1 // pred_check
      _
    $region103: #{tpu_custom_call.1} parent=1 // pred_check_branch
      %155 = sbr.rel (0) target = $region105
    $region104: #{tpu_custom_call.1} parent=1 // pred_region
      %156 = dma.done [#allocation5], 16
    $region105: #{tpu_custom_call.1} parent=1 // pred_fallthru
      _
    %157 = sfence
    %v158 = vld [vmem:[#allocation3] sm:$0xff]
    %v159 = vld [vmem:[#allocation9] sm:$0xff]
    %v160 = vld [vmem:[#allocation9 + $0x8] sm:$0xff]
    %v161 = vld [vmem:[#allocation6] sm:$0xff]
    %v162 = vld [vmem:[#allocation11] sm:$0xff]
    %vm163 = vcmask 64512
    %v165 = vsel %vm163, %v161, 0
    %167 = vmatprep.subr.mxu0 0.0
    %168 = vmatpush1.msra.mxu0 %v162
    %169 = vmatprep.subr.mxu0 0.0
    %170 = vmatpush1.msra.mxu0 0.0
    %171 = vmatprep.subr.mxu0 0.0
    %172 = vmatpush1.msra.mxu0 0.0
    %173 = vmatprep.subr.mxu0 0.0
    %174 = vmatpush1.msra.mxu0 0.0
    %175 = vmatprep.subr.mxu0 0.0
    %176 = vmatpush1.msra.mxu0 0.0
    %177 = vmatprep.subr.mxu0 0.0
    %178 = vmatpush1.msra.mxu0 0.0
    %179 = vmatprep.subr.mxu0 0.0
    %180 = vmatpush1.msra.mxu0 0.0
    %181 = vmatprep.subr.mxu0 0.0
    %182 = vmatpush1.msra.mxu0 0.0
    %183 = vmatprep.subr.mxu0 0.0
    %184 = vmatpush1.msra.mxu0 0.0
    %185 = vmatprep.subr.mxu0 0.0
    %186 = vmatpush1.msra.mxu0 0.0
    %187 = vmatprep.subr.mxu0 0.0
    %188 = vmatpush1.msra.mxu0 0.0
    %189 = vmatprep.subr.mxu0 0.0
    %190 = vmatpush1.msra.mxu0 0.0
    %191 = vmatprep.subr.mxu0 0.0
    %192 = vmatpush1.msra.mxu0 0.0
    %193 = vmatprep.subr.mxu0 0.0
    %194 = vmatpush1.msra.mxu0 0.0
    %195 = vmatprep.subr.mxu0 0.0
    %196 = vmatpush1.msra.mxu0 0.0
    %197 = vmatprep.subr.mxu0 0.0
    %198 = vmatpush1.msra.mxu0 0.0
    %199 = vmatprep.subr.mxu0 0.0
    %200 = vmatpush1.msra.mxu0 0.0
    %201 = vmatprep.subr.mxu0 0.0
    %202 = vmatpush1.msra.mxu0 0.0
    %203 = vmatprep.subr.mxu0 0.0
    %204 = vmatpush1.msra.mxu0 0.0
    %205 = vmatprep.subr.mxu0 0.0
    %206 = vmatpush1.msra.mxu0 0.0
    %207 = vmatprep.subr.mxu0 0.0
    %208 = vmatpush1.msra.mxu0 0.0
    %209 = vmatprep.subr.mxu0 0.0
    %210 = vmatpush1.msra.mxu0 0.0
    %211 = vmatprep.subr.mxu0 0.0
    %212 = vmatpush1.msra.mxu0 0.0
    %213 = vmatprep.subr.mxu0 0.0
    %214 = vmatpush1.msra.mxu0 0.0
    %215 = vmatprep.subr.mxu0 0.0
    %216 = vmatpush1.msra.mxu0 0.0
    %217 = vmatprep.subr.mxu0 0.0
    %218 = vmatpush1.msra.mxu0 0.0
    %219 = vmatprep.subr.mxu0 0.0
    %220 = vmatpush1.msra.mxu0 0.0
    %221 = vmatprep.subr.mxu0 0.0
    %222 = vmatpush1.msra.mxu0 0.0
    %223 = vmatprep.subr.mxu0 0.0
    %224 = vmatpush1.msra.mxu0 0.0
    %225 = vmatprep.subr.mxu0 0.0
    %226 = vmatpush1.msra.mxu0 0.0
    %227 = vmatprep.subr.mxu0 0.0
    %228 = vmatpush1.msra.mxu0 0.0
    %229 = vmatprep.subr.mxu0 0.0
    %230 = vmatpush1.msra.mxu0 0.0
    %231 = vmatprep.mubr.f32.mxu0 0.0
    %232 = vmatmul.mubr.f32.gmra.mrb[0].mxu0 %v165
    %v233 = vpop.f32.mrb[0].mxu0
    %v234 = vadd.f32 0.0, %v233
    %v235 = vpop.f32.mrb[0].mxu0
    %236 = vdwg.mxu0
    %vm237 = vcmask 130048
    %v239 = vsel %vm237, %v158, 0
    %241 = vmatprep.subr.mxu0 0.0
    %242 = vmatpush1.msra.mxu0 %v159
    %243 = vmatprep.subr.mxu0 0.0
    %244 = vmatpush1.msra.mxu0 %v160
    %245 = vmatprep.subr.mxu0 0.0
    %246 = vmatpush1.msra.mxu0 0.0
    %247 = vmatprep.subr.mxu0 0.0
    %248 = vmatpush1.msra.mxu0 0.0
    %249 = vmatprep.subr.mxu0 0.0
    %250 = vmatpush1.msra.mxu0 0.0
    %251 = vmatprep.subr.mxu0 0.0
    %252 = vmatpush1.msra.mxu0 0.0
    %253 = vmatprep.subr.mxu0 0.0
    %254 = vmatpush1.msra.mxu0 0.0
    %255 = vmatprep.subr.mxu0 0.0
    %256 = vmatpush1.msra.mxu0 0.0
    %257 = vmatprep.subr.mxu0 0.0
    %258 = vmatpush1.msra.mxu0 0.0
    %259 = vmatprep.subr.mxu0 0.0
    %260 = vmatpush1.msra.mxu0 0.0
    %261 = vmatprep.subr.mxu0 0.0
    %262 = vmatpush1.msra.mxu0 0.0
    %263 = vmatprep.subr.mxu0 0.0
    %264 = vmatpush1.msra.mxu0 0.0
    %265 = vmatprep.subr.mxu0 0.0
    %266 = vmatpush1.msra.mxu0 0.0
    %267 = vmatprep.subr.mxu0 0.0
    %268 = vmatpush1.msra.mxu0 0.0
    %269 = vmatprep.subr.mxu0 0.0
    %270 = vmatpush1.msra.mxu0 0.0
    %271 = vmatprep.subr.mxu0 0.0
    %272 = vmatpush1.msra.mxu0 0.0
    %273 = vmatprep.subr.mxu0 0.0
    %274 = vmatpush1.msra.mxu0 0.0
    %275 = vmatprep.subr.mxu0 0.0
    %276 = vmatpush1.msra.mxu0 0.0
    %277 = vmatprep.subr.mxu0 0.0
    %278 = vmatpush1.msra.mxu0 0.0
    %279 = vmatprep.subr.mxu0 0.0
    %280 = vmatpush1.msra.mxu0 0.0
    %281 = vmatprep.subr.mxu0 0.0
    %282 = vmatpush1.msra.mxu0 0.0
    %283 = vmatprep.subr.mxu0 0.0
    %284 = vmatpush1.msra.mxu0 0.0
    %285 = vmatprep.subr.mxu0 0.0
    %286 = vmatpush1.msra.mxu0 0.0
    %287 = vmatprep.subr.mxu0 0.0
    %288 = vmatpush1.msra.mxu0 0.0
    %289 = vmatprep.subr.mxu0 0.0
    %290 = vmatpush1.msra.mxu0 0.0
    %291 = vmatprep.subr.mxu0 0.0
    %292 = vmatpush1.msra.mxu0 0.0
    %293 = vmatprep.subr.mxu0 0.0
    %294 = vmatpush1.msra.mxu0 0.0
    %295 = vmatprep.subr.mxu0 0.0
    %296 = vmatpush1.msra.mxu0 0.0
    %297 = vmatprep.subr.mxu0 0.0
    %298 = vmatpush1.msra.mxu0 0.0
    %299 = vmatprep.subr.mxu0 0.0
    %300 = vmatpush1.msra.mxu0 0.0
    %301 = vmatprep.subr.mxu0 0.0
    %302 = vmatpush1.msra.mxu0 0.0
    %303 = vmatprep.subr.mxu0 0.0
    %304 = vmatpush1.msra.mxu0 0.0
    %305 = vmatprep.mubr.f32.mxu0 0.0
    %306 = vmatmul.mubr.f32.gmra.mrb[0].mxu0 %v239
    %v307 = vpop.f32.mrb[0].mxu0
    %v308 = vadd.f32 %v234, %v307
    %v309 = vpop.f32.mrb[0].mxu0
    %310 = vdwg.mxu0
    %v311 = vld [vmem:[%s2] sm:$0xff]
    %v312 = vld [vmem:[#allocation12] sm:$0xff]
    %v313 = vld [vmem:[#allocation12 + $0x8] sm:$0xff]
    %v315 = vsel %vm237, %v311, 0
    %317 = vmatprep.subr.mxu0 0.0
    %318 = vmatpush1.msra.mxu0 %v312
    %319 = vmatprep.subr.mxu0 0.0
    %320 = vmatpush1.msra.mxu0 %v313
    %321 = vmatprep.subr.mxu0 0.0
    %322 = vmatpush1.msra.mxu0 0.0
    %323 = vmatprep.subr.mxu0 0.0
    %324 = vmatpush1.msra.mxu0 0.0
    %325 = vmatprep.subr.mxu0 0.0
    %326 = vmatpush1.msra.mxu0 0.0
    %327 = vmatprep.subr.mxu0 0.0
    %328 = vmatpush1.msra.mxu0 0.0
    %329 = vmatprep.subr.mxu0 0.0
    %330 = vmatpush1.msra.mxu0 0.0
    %331 = vmatprep.subr.mxu0 0.0
    %332 = vmatpush1.msra.mxu0 0.0
    %333 = vmatprep.subr.mxu0 0.0
    %334 = vmatpush1.msra.mxu0 0.0
    %335 = vmatprep.subr.mxu0 0.0
    %336 = vmatpush1.msra.mxu0 0.0
    %337 = vmatprep.subr.mxu0 0.0
    %338 = vmatpush1.msra.mxu0 0.0
    %339 = vmatprep.subr.mxu0 0.0
    %340 = vmatpush1.msra.mxu0 0.0
    %341 = vmatprep.subr.mxu0 0.0
    %342 = vmatpush1.msra.mxu0 0.0
    %343 = vmatprep.subr.mxu0 0.0
    %344 = vmatpush1.msra.mxu0 0.0
    %345 = vmatprep.subr.mxu0 0.0
    %346 = vmatpush1.msra.mxu0 0.0
    %347 = vmatprep.subr.mxu0 0.0
    %348 = vmatpush1.msra.mxu0 0.0
    %349 = vmatprep.subr.mxu0 0.0
    %350 = vmatpush1.msra.mxu0 0.0
    %351 = vmatprep.subr.mxu0 0.0
    %352 = vmatpush1.msra.mxu0 0.0
    %353 = vmatprep.subr.mxu0 0.0
    %354 = vmatpush1.msra.mxu0 0.0
    %355 = vmatprep.subr.mxu0 0.0
    %356 = vmatpush1.msra.mxu0 0.0
    %357 = vmatprep.subr.mxu0 0.0
    %358 = vmatpush1.msra.mxu0 0.0
    %359 = vmatprep.subr.mxu0 0.0
    %360 = vmatpush1.msra.mxu0 0.0
    %361 = vmatprep.subr.mxu0 0.0
    %362 = vmatpush1.msra.mxu0 0.0
    %363 = vmatprep.subr.mxu0 0.0
    %364 = vmatpush1.msra.mxu0 0.0
    %365 = vmatprep.subr.mxu0 0.0
    %366 = vmatpush1.msra.mxu0 0.0
    %367 = vmatprep.subr.mxu0 0.0
    %368 = vmatpush1.msra.mxu0 0.0
    %369 = vmatprep.subr.mxu0 0.0
    %370 = vmatpush1.msra.mxu0 0.0
    %371 = vmatprep.subr.mxu0 0.0
    %372 = vmatpush1.msra.mxu0 0.0
    %373 = vmatprep.subr.mxu0 0.0
    %374 = vmatpush1.msra.mxu0 0.0
    %375 = vmatprep.subr.mxu0 0.0
    %376 = vmatpush1.msra.mxu0 0.0
    %377 = vmatprep.subr.mxu0 0.0
    %378 = vmatpush1.msra.mxu0 0.0
    %379 = vmatprep.subr.mxu0 0.0
    %380 = vmatpush1.msra.mxu0 0.0
    %381 = vmatprep.mubr.f32.mxu0 0.0
    %382 = vmatmul.mubr.f32.gmra.mrb[0].mxu0 %v315
    %v383 = vpop.f32.mrb[0].mxu0
    %v384 = vadd.f32 0.0, %v383
    %v385 = vpop.f32.mrb[0].mxu0
    %386 = vdwg.mxu0
    %v387 = vadd.f32 %v308, %v384
    %v388 = vld [vmem:[#allocation8] sm:$0xff]
    %v389 = vld [vmem:[#allocation14] sm:$0xff]
    %v391 = vsel %vm163, %v388, 0
    %393 = vmatprep.subr.mxu0 0.0
    %394 = vmatpush1.msra.mxu0 %v389
    %395 = vmatprep.subr.mxu0 0.0
    %396 = vmatpush1.msra.mxu0 0.0
    %397 = vmatprep.subr.mxu0 0.0
    %398 = vmatpush1.msra.mxu0 0.0
    %399 = vmatprep.subr.mxu0 0.0
    %400 = vmatpush1.msra.mxu0 0.0
    %401 = vmatprep.subr.mxu0 0.0
    %402 = vmatpush1.msra.mxu0 0.0
    %403 = vmatprep.subr.mxu0 0.0
    %404 = vmatpush1.msra.mxu0 0.0
    %405 = vmatprep.subr.mxu0 0.0
    %406 = vmatpush1.msra.mxu0 0.0
    %407 = vmatprep.subr.mxu0 0.0
    %408 = vmatpush1.msra.mxu0 0.0
    %409 = vmatprep.subr.mxu0 0.0
    %410 = vmatpush1.msra.mxu0 0.0
    %411 = vmatprep.subr.mxu0 0.0
    %412 = vmatpush1.msra.mxu0 0.0
    %413 = vmatprep.subr.mxu0 0.0
    %414 = vmatpush1.msra.mxu0 0.0
    %415 = vmatprep.subr.mxu0 0.0
    %416 = vmatpush1.msra.mxu0 0.0
    %417 = vmatprep.subr.mxu0 0.0
    %418 = vmatpush1.msra.mxu0 0.0
    %419 = vmatprep.subr.mxu0 0.0
    %420 = vmatpush1.msra.mxu0 0.0
    %421 = vmatprep.subr.mxu0 0.0
    %422 = vmatpush1.msra.mxu0 0.0
    %423 = vmatprep.subr.mxu0 0.0
    %424 = vmatpush1.msra.mxu0 0.0
    %425 = vmatprep.subr.mxu0 0.0
    %426 = vmatpush1.msra.mxu0 0.0
    %427 = vmatprep.subr.mxu0 0.0
    %428 = vmatpush1.msra.mxu0 0.0
    %429 = vmatprep.subr.mxu0 0.0
    %430 = vmatpush1.msra.mxu0 0.0
    %431 = vmatprep.subr.mxu0 0.0
    %432 = vmatpush1.msra.mxu0 0.0
    %433 = vmatprep.subr.mxu0 0.0
    %434 = vmatpush1.msra.mxu0 0.0
    %435 = vmatprep.subr.mxu0 0.0
    %436 = vmatpush1.msra.mxu0 0.0
    %437 = vmatprep.subr.mxu0 0.0
    %438 = vmatpush1.msra.mxu0 0.0
    %439 = vmatprep.subr.mxu0 0.0
    %440 = vmatpush1.msra.mxu0 0.0
    %441 = vmatprep.subr.mxu0 0.0
    %442 = vmatpush1.msra.mxu0 0.0
    %443 = vmatprep.subr.mxu0 0.0
    %444 = vmatpush1.msra.mxu0 0.0
    %445 = vmatprep.subr.mxu0 0.0
    %446 = vmatpush1.msra.mxu0 0.0
    %447 = vmatprep.subr.mxu0 0.0
    %448 = vmatpush1.msra.mxu0 0.0
    %449 = vmatprep.subr.mxu0 0.0
    %450 = vmatpush1.msra.mxu0 0.0
    %451 = vmatprep.subr.mxu0 0.0
    %452 = vmatpush1.msra.mxu0 0.0
    %453 = vmatprep.subr.mxu0 0.0
    %454 = vmatpush1.msra.mxu0 0.0
    %455 = vmatprep.subr.mxu0 0.0
    %456 = vmatpush1.msra.mxu0 0.0
    %457 = vmatprep.mubr.f32.mxu0 0.0
    %458 = vmatmul.mubr.f32.gmra.mrb[0].mxu0 %v391
    %v459 = vpop.f32.mrb[0].mxu0
    %v460 = vadd.f32 0.0, %v459
    %v461 = vpop.f32.mrb[0].mxu0
    %462 = vdwg.mxu0
    %v463 = vadd.f32 %v387, %v460
    %v464 = vld [vmem:[%s8] sm:$0x1]
    %v466 = vlaneseq
    %v467 = vshrl.u32 %v466, 7
    %v468 = vsub.s32 0, %v467
    %v469 = vrot.slane %v464, %v468
    %v471 = vadd.f32 %v463, %v469
    %v472 = vld [vmem:[%s9] sm:$0x1]
    %v473 = vld [vmem:[%s10] sm:$0x1]
    %s474 = sld [smem:[#allocation15]]
    %vm475 = vcmask 261120
    %v476 = vsel %vm475, %v471, 0.0
    %v477 = vrot.slane %v476, 4
    %v478 = vadd.f32 %v476, %v477
    %v479 = vrot.slane %v478, 2
    %v480 = vadd.f32 %v478, %v479
    %v481 = vrot.slane %v480, 1
    %v482 = vadd.f32 %v480, %v481
    %v483 = vrcp.pop 8.0
    %v484 = vmul.f32 %v482, %v483
    %v485 = vmul.f32 %v471, %v471
    %v486 = vsel %vm475, %v485, 0.0
    %v487 = vrot.slane %v486, 4
    %v488 = vadd.f32 %v486, %v487
    %v489 = vrot.slane %v488, 2
    %v490 = vadd.f32 %v488, %v489
    %v491 = vrot.slane %v490, 1
    %v492 = vadd.f32 %v490, %v491
    %v493 = vmul.f32 %v492, %v483
    %v494 = vmul.f32 %v484, %v484
    %v495 = vsub.f32 %v493, %v494
    %v496 = vmax.f32 %v495, 0.0
    %v497 = vadd.f32 %v496, 1e-05
    %v498 = vrsqrt.pop %v497
    %v499 = vmul.f32 %v472, %v498
    %v500 = vmul.f32 %v484, %v499
    %v501 = vsub.f32 %v473, %v500
    %v503 = vlaneseq
    %v504 = vshrl.u32 %v503, 7
    %v505 = vsub.s32 0, %v504
    %v506 = vrot.slane %v499, %v505
    %v508 = vmul.f32 %v471, %v506
    %v510 = vlaneseq
    %v511 = vshrl.u32 %v510, 7
    %v512 = vsub.s32 0, %v511
    %v513 = vrot.slane %v501, %v512
    %v515 = vadd.f32 %v508, %v513
    %vm516 = vcmp.ge.f32.partialorder %v515, 0.0
    %v517 = vstv %s474
    %v518 = vmul.f32 %v517, %v515
    %v519 = vsel %vm516, %v515, %v518
    %v520 = vld [vmem:[%s11] sm:$0xff]
    %v521 = vld [vmem:[%s11 + $0x8] sm:$0xff]
    %v522 = vld [vmem:[%s11 + $0x10] sm:$0xff]
    %v523 = vld [vmem:[%s11 + $0x18] sm:$0xff]
    %v524 = vld [vmem:[%s12] sm:$0x1]
    %v526 = vlaneseq
    %v527 = vshrl.u32 %v526, 7
    %v528 = vsub.s32 0, %v527
    %v529 = vrot.slane %v524, %v528
    %v532 = vsel %vm475, %v519, 0
    %534 = vmatprep.subr.mxu0 0.0
    %535 = vmatpush1.msra.mxu0 %v520
    %536 = vmatprep.subr.mxu0 0.0
    %537 = vmatpush1.msra.mxu0 %v521
    %538 = vmatprep.subr.mxu0 0.0
    %539 = vmatpush1.msra.mxu0 %v522
    %540 = vmatprep.subr.mxu0 0.0
    %541 = vmatpush1.msra.mxu0 %v523
    %542 = vmatprep.subr.mxu0 0.0
    %543 = vmatpush1.msra.mxu0 0.0
    %544 = vmatprep.subr.mxu0 0.0
    %545 = vmatpush1.msra.mxu0 0.0
    %546 = vmatprep.subr.mxu0 0.0
    %547 = vmatpush1.msra.mxu0 0.0
    %548 = vmatprep.subr.mxu0 0.0
    %549 = vmatpush1.msra.mxu0 0.0
    %550 = vmatprep.subr.mxu0 0.0
    %551 = vmatpush1.msra.mxu0 0.0
    %552 = vmatprep.subr.mxu0 0.0
    %553 = vmatpush1.msra.mxu0 0.0
    %554 = vmatprep.subr.mxu0 0.0
    %555 = vmatpush1.msra.mxu0 0.0
    %556 = vmatprep.subr.mxu0 0.0
    %557 = vmatpush1.msra.mxu0 0.0
    %558 = vmatprep.subr.mxu0 0.0
    %559 = vmatpush1.msra.mxu0 0.0
    %560 = vmatprep.subr.mxu0 0.0
    %561 = vmatpush1.msra.mxu0 0.0
    %562 = vmatprep.subr.mxu0 0.0
    %563 = vmatpush1.msra.mxu0 0.0
    %564 = vmatprep.subr.mxu0 0.0
    %565 = vmatpush1.msra.mxu0 0.0
    %566 = vmatprep.subr.mxu0 0.0
    %567 = vmatpush1.msra.mxu0 0.0
    %568 = vmatprep.subr.mxu0 0.0
    %569 = vmatpush1.msra.mxu0 0.0
    %570 = vmatprep.subr.mxu0 0.0
    %571 = vmatpush1.msra.mxu0 0.0
    %572 = vmatprep.subr.mxu0 0.0
    %573 = vmatpush1.msra.mxu0 0.0
    %574 = vmatprep.subr.mxu0 0.0
    %575 = vmatpush1.msra.mxu0 0.0
    %576 = vmatprep.subr.mxu0 0.0
    %577 = vmatpush1.msra.mxu0 0.0
    %578 = vmatprep.subr.mxu0 0.0
    %579 = vmatpush1.msra.mxu0 0.0
    %580 = vmatprep.subr.mxu0 0.0
    %581 = vmatpush1.msra.mxu0 0.0
    %582 = vmatprep.subr.mxu0 0.0
    %583 = vmatpush1.msra.mxu0 0.0
    %584 = vmatprep.subr.mxu0 0.0
    %585 = vmatpush1.msra.mxu0 0.0
    %586 = vmatprep.subr.mxu0 0.0
    %587 = vmatpush1.msra.mxu0 0.0
    %588 = vmatprep.subr.mxu0 0.0
    %589 = vmatpush1.msra.mxu0 0.0
    %590 = vmatprep.subr.mxu0 0.0
    %591 = vmatpush1.msra.mxu0 0.0
    %592 = vmatprep.subr.mxu0 0.0
    %593 = vmatpush1.msra.mxu0 0.0
    %594 = vmatprep.subr.mxu0 0.0
    %595 = vmatpush1.msra.mxu0 0.0
    %596 = vmatprep.subr.mxu0 0.0
    %597 = vmatpush1.msra.mxu0 0.0
    %598 = vmatprep.mubr.f32.mxu0 0.0
    %599 = vmatmul.mubr.f32.gmra.mrb[0].mxu0 %v532
    %v600 = vpop.f32.mrb[0].mxu0
    %v601 = vadd.f32 %v529, %v600
    %v602 = vpop.f32.mrb[0].mxu0
    %603 = vdwg.mxu0
    %v604 = vld [vmem:[%s13] sm:$0x1]
    %v605 = vld [vmem:[%s14] sm:$0x1]
    %s606 = sld [smem:[#allocation15 + $0x1]]
    %v607 = vsel %vm475, %v601, 0.0
    %v608 = vrot.slane %v607, 4
    %v609 = vadd.f32 %v607, %v608
    %v610 = vrot.slane %v609, 2
    %v611 = vadd.f32 %v609, %v610
    %v612 = vrot.slane %v611, 1
    %v613 = vadd.f32 %v611, %v612
    %v614 = vmul.f32 %v613, %v483
    %v615 = vmul.f32 %v601, %v601
    %v616 = vsel %vm475, %v615, 0.0
    %v617 = vrot.slane %v616, 4
    %v618 = vadd.f32 %v616, %v617
    %v619 = vrot.slane %v618, 2
    %v620 = vadd.f32 %v618, %v619
    %v621 = vrot.slane %v620, 1
    %v622 = vadd.f32 %v620, %v621
    %v623 = vmul.f32 %v622, %v483
    %v624 = vmul.f32 %v614, %v614
    %v625 = vsub.f32 %v623, %v624
    %v626 = vmax.f32 %v625, 0.0
    %v627 = vadd.f32 %v626, 1e-05
    %v628 = vrsqrt.pop %v627
    %v629 = vmul.f32 %v604, %v628
    %v630 = vmul.f32 %v614, %v629
    %v631 = vsub.f32 %v605, %v630
    %v633 = vlaneseq
    %v634 = vshrl.u32 %v633, 7
    %v635 = vsub.s32 0, %v634
    %v636 = vrot.slane %v629, %v635
    %v638 = vmul.f32 %v601, %v636
    %v640 = vlaneseq
    %v641 = vshrl.u32 %v640, 7
    %v642 = vsub.s32 0, %v641
    %v643 = vrot.slane %v631, %v642
    %v645 = vadd.f32 %v638, %v643
    %vm646 = vcmp.ge.f32.partialorder %v645, 0.0
    %v647 = vstv %s606
    %v648 = vmul.f32 %v647, %v645
    %v649 = vsel %vm646, %v645, %v648
    %v650 = vld [vmem:[%s16] sm:$0x1]
    %v652 = vlaneseq
    %v653 = vshrl.u32 %v652, 7
    %v654 = vsub.s32 0, %v653
    %v655 = vrot.slane %v650, %v654
    %v657 = vmul.f32 %v649, %v655
    %v658 = vsel %vm475, %v657, 0.0
    %659 = vadd.xlane.f32.xlu0 %v658
    %v660 = vpop.xlane.xlu0 %659
    %s661 = sld [smem:[#allocation2]]
    %v662 = vstv %s661
    %v663 = vadd.f32 %v660, %v662
    %v664 = vxor.u32 %v663, 2147483648
    %v665 = vmul.f32 %v664, 1.442695
    %v666 = vpow.pop %v665
    %v667 = vadd.f32 %v666, 1.0
    %v668 = vrcp.pop %v667
    %v669 = vmul.f32 1.0, %v668
    %vm670 = vcmask 7168
    %671 = vst.msk [vmem:[%s18] sm:$0xff] %vm670, %v669
    // Predicated region
    $region106: #{tpu_custom_call.1} parent=1 // pred_check
      _
    $region107: #{tpu_custom_call.1} parent=1 // pred_check_branch
      %673 = sbr.rel (0) target = $region109
    $region108: #{tpu_custom_call.1} parent=1 // pred_region
      _
    $region109: #{tpu_custom_call.1} parent=1 // pred_fallthru
      _
    // Predicated region
    $region110: #{tpu_custom_call.1} parent=1 // pred_check
      _
    $region111: #{tpu_custom_call.1} parent=1 // pred_check_branch
      %675 = sbr.rel (0) target = $region113
    $region112: #{tpu_custom_call.1} parent=1 // pred_region
      _
    $region113: #{tpu_custom_call.1} parent=1 // pred_fallthru
      _
    %676 = vsyncpa [#allocation4], 1
    %677 = vsyncpa [#allocation7], 1
    %678 = vsyncpa [#allocation10], 1
    %679 = vsyncpa [#allocation13], 1
    %680 = vsyncpa [#allocation5], 1

</llo_original>
